<compile_context>
chip_gen: v5e
topology: v5e:2x2
jax: 0.10.0
libtpu: 0.0.40
codegen_flags: <defaults>
</compile_context>

<pallas_src>
import jax
import jax.numpy as jnp
from jax.experimental import pallas as pl
from jax.experimental.pallas import tpu as pltpu


def _two_vector_kernel(x1_ref, x2_ref,
                       w1a_ref, b1a_ref,
                       w1b_ref, b1b_ref,
                       w2a_ref, w2b_ref, b2_ref,
                       w3_ref, b3_ref,
                       out_ref):
    f32 = jnp.float32
    bf16 = jnp.bfloat16

    # Accept bf16 inputs directly; cast f32 inputs in-register (VALU) for MXU.
    x1 = x1_ref[...]
    if x1.dtype != bf16:
        x1 = x1.astype(bf16)
    x2 = x2_ref[...]
    if x2.dtype != bf16:
        x2 = x2.astype(bf16)

    # fc1_a / fc1_b: bf16 x bf16 MXU matmuls, f32 accumulation; bias+ReLU f32.
    h1 = jnp.dot(x1, w1a_ref[...], preferred_element_type=f32)
    h1 = jnp.maximum(h1 + b1a_ref[...], 0.0)
    h2 = jnp.dot(x2, w1b_ref[...], preferred_element_type=f32)
    h2 = jnp.maximum(h2 + b1b_ref[...], 0.0)

    # fc2: cat((h1, h2), dim=1) @ W2 == h1 @ W2[:R] + h2 @ W2[R:].
    # Post-ReLU activations are down-cast to bf16 so both dots stay
    # bf16 x bf16 on the MXU (single pass) with f32 accumulation.
    h = (jnp.dot(h1.astype(bf16), w2a_ref[...], preferred_element_type=f32)
         + jnp.dot(h2.astype(bf16), w2b_ref[...], preferred_element_type=f32))
    h = jnp.maximum(h + b2_ref[...], 0.0)

    # fc3 (out_features == 1): VPU multiply + lane reduction instead of a
    # degenerate N=1 MXU matmul.
    y = jnp.sum(h * w3_ref[...], axis=-1, keepdims=True) + b3_ref[...]
    out_ref[...] = y.astype(out_ref.dtype)


def _choose_tm(batch, tm):
    """Batch-tile size: multiple of 8, capped so there are >= 2 grid steps
    whenever the batch allows it (keeps v7x's second TensorCore busy)."""
    if batch <= 8:
        return batch                      # one block equal to the full batch
    tm = max(8, (tm // 8) * 8)
    half = -(-batch // 2)                 # ceil(batch / 2)
    half = -(-half // 8) * 8              # rounded up to a multiple of 8
    return min(tm, half)


def two_vector_classifier(x1, x2, params, *, tm=512):
    """Fused forward pass. params come from init_params()."""
    (w1a, b1a, w1b, b1b, w2a, w2b, b2, w3_row, b3) = params
    B, D1 = x1.shape
    D2 = x2.shape[1]
    R = w1a.shape[1]
    H = w2a.shape[1]

    tm = _choose_tm(B, tm)
    n_tiles = pl.cdiv(B, tm)   # no wrapper-side padding; ragged last tile OK
                               # (rows are independent, OOB writes dropped)

    def row_spec(cols):
        return pl.BlockSpec((tm, cols), lambda i: (i, 0))

    def resident_spec(shape):
        return pl.BlockSpec(shape, lambda i: (0, 0))

    flops = 2.0 * B * (D1 * R + D2 * R + 2 * R * H + H)
    bytes_accessed = (x1.size * x1.dtype.itemsize
                      + x2.size * x2.dtype.itemsize
                      + sum(int(p.size) * p.dtype.itemsize for p in params)
                      + B * 4)

    out = pl.pallas_call(
        _two_vector_kernel,
        out_shape=jax.ShapeDtypeStruct((B, 1), jnp.float32),
        grid=(n_tiles,),
        in_specs=[
            row_spec(D1),              # x1 batch tile (dtype as supplied)
            row_spec(D2),              # x2 batch tile
            resident_spec((D1, R)),    # w1a (bf16, VMEM-resident across tiles)
            resident_spec((1, R)),     # b1a
            resident_spec((D2, R)),    # w1b (bf16)
            resident_spec((1, R)),     # b1b
            resident_spec((R, H)),     # w2[:R]  (bf16, pre-split in init)
            resident_spec((R, H)),     # w2[R:]  (bf16)
            resident_spec((1, H)),     # b2
            resident_spec((1, H)),     # w3 as a [1, H] f32 row
            resident_spec((1, 1)),     # b3
        ],
        out_specs=pl.BlockSpec((tm, 1), lambda i: (i, 0)),
        compiler_params=pltpu.CompilerParams(
            dimension_semantics=("parallel",),
            vmem_limit_bytes=32 * 1024 * 1024),
        cost_estimate=pl.CostEstimate(
            flops=int(flops),
            transcendentals=0,
            bytes_accessed=int(bytes_accessed)),
    )(x1, x2, w1a, b1a, w1b, b1b, w2a, w2b, b2, w3_row, b3)

    return out


def init_params(key, input_dim=768, reduced_dim=256, hidden_dim=128):
    """PyTorch-style Linear init. Weights stored as [in, out]; big weights
    pre-cast to bf16 and fc2 pre-split so the per-call wrapper does no prep."""
    ks = jax.random.split(key, 8)

    def lin(kw, kb, fan_in, fan_out):
        bound = 1.0 / jnp.sqrt(fan_in)
        w = jax.random.uniform(kw, (fan_in, fan_out), jnp.float32, -bound, bound)
        b = jax.random.uniform(kb, (fan_out,), jnp.float32, -bound, bound)
        return w, b

    w1a, b1a = lin(ks[0], ks[1], input_dim * 3, reduced_dim)
    w1b, b1b = lin(ks[2], ks[3], input_dim, reduced_dim)
    w2, b2 = lin(ks[4], ks[5], reduced_dim * 2, hidden_dim)
    w3, b3 = lin(ks[6], ks[7], hidden_dim, 1)

    return (
        w1a.astype(jnp.bfloat16), b1a.reshape(1, -1),
        w1b.astype(jnp.bfloat16), b1b.reshape(1, -1),
        w2[:reduced_dim].astype(jnp.bfloat16),     # W2 split once, here
        w2[reduced_dim:].astype(jnp.bfloat16),
        b2.reshape(1, -1),
        w3.reshape(1, -1),                          # fc3 weight as [1, H] f32 row
        b3.reshape(1, 1),
    )


def reference_forward(x1, x2, params):
    """Pure-JAX reference using the same stored (bf16-quantized) weights and
    the same bf16-operand / f32-accumulate dot recipe as the kernel."""
    (w1a, b1a, w1b, b1b, w2a, w2b, b2, w3_row, b3) = params
    f32 = jnp.float32
    bf16 = jnp.bfloat16
    h1 = jax.nn.relu(jnp.dot(x1.astype(bf16), w1a, preferred_element_type=f32) + b1a)
    h2 = jax.nn.relu(jnp.dot(x2.astype(bf16), w1b, preferred_element_type=f32) + b1b)
    h = jax.nn.relu(jnp.dot(h1.astype(bf16), w2a, preferred_element_type=f32)
                    + jnp.dot(h2.astype(bf16), w2b, preferred_element_type=f32) + b2)
    return jnp.sum(h * w3_row, axis=-1, keepdims=True) + b3


if __name__ == "__main__":
    # Small but layout-friendly shapes consistent with the module's structure.
    # NOTE: weights are stored in bf16, so results differ from an f32 PyTorch
    # model by ~1e-3 relative; the reference uses the same quantized weights.
    input_dim, reduced_dim, hidden_dim = 128, 128, 128

    key = jax.random.PRNGKey(0)
    kx1, kx2, kp = jax.random.split(key, 3)
    params = init_params(kp, input_dim, reduced_dim, hidden_dim)

    # batch=16 exercises an aligned 2-tile grid; batch=13 exercises the
    # unpadded ragged last tile (OOB reads dropped on writeback).
    for batch in (16, 13):
        x1 = jax.random.normal(kx1, (batch, input_dim * 3), jnp.float32)
        x2 = jax.random.normal(kx2, (batch, input_dim), jnp.float32)

        out = jax.block_until_ready(two_vector_classifier(x1, x2, params))
        ref = reference_forward(x1, x2, params)

        assert out.shape == (batch, 1), out.shape
        max_err = float(jnp.max(jnp.abs(out - ref)))
        assert jnp.allclose(out, ref, atol=2e-3, rtol=2e-3), max_err

    print("KERNEL_OK")
</pallas_src>

<mosaic_0001>
module attributes {stable_mosaic.version = 11 : i64} {
  func.func @_two_vector_kernel(%arg0: i32, %arg1: memref<8x384xf32, #tpu.memory_space<vmem>>, %arg2: memref<8x128xf32, #tpu.memory_space<vmem>>, %arg3: memref<384x128xbf16, #tpu.memory_space<vmem>>, %arg4: memref<1x128xf32, #tpu.memory_space<vmem>>, %arg5: memref<128x128xbf16, #tpu.memory_space<vmem>>, %arg6: memref<1x128xf32, #tpu.memory_space<vmem>>, %arg7: memref<128x128xbf16, #tpu.memory_space<vmem>>, %arg8: memref<128x128xbf16, #tpu.memory_space<vmem>>, %arg9: memref<1x128xf32, #tpu.memory_space<vmem>>, %arg10: memref<1x128xf32, #tpu.memory_space<vmem>>, %arg11: memref<1x1xf32, #tpu.memory_space<vmem>>, %arg12: memref<8x1xf32, #tpu.memory_space<vmem>>) attributes {dimension_semantics = [#tpu.dimension_semantics<parallel>], iteration_bounds = array<i64: 2>, scalar_prefetch = 0 : i64, scratch_operands = 0 : i64, tpu.core_type = #tpu.core_type<tc>, window_params = [{transform_indices = @transform_0, window_bounds = array<i64: 8, 384>}, {transform_indices = @transform_1, window_bounds = array<i64: 8, 128>}, {pipeline_mode = #tpu.pipeline_mode<synchronous>, transform_indices = @transform_2, window_bounds = array<i64: 384, 128>}, {pipeline_mode = #tpu.pipeline_mode<synchronous>, transform_indices = @transform_3, window_bounds = array<i64: 1, 128>}, {pipeline_mode = #tpu.pipeline_mode<synchronous>, transform_indices = @transform_4, window_bounds = array<i64: 128, 128>}, {pipeline_mode = #tpu.pipeline_mode<synchronous>, transform_indices = @transform_5, window_bounds = array<i64: 1, 128>}, {pipeline_mode = #tpu.pipeline_mode<synchronous>, transform_indices = @transform_6, window_bounds = array<i64: 128, 128>}, {pipeline_mode = #tpu.pipeline_mode<synchronous>, transform_indices = @transform_7, window_bounds = array<i64: 128, 128>}, {pipeline_mode = #tpu.pipeline_mode<synchronous>, transform_indices = @transform_8, window_bounds = array<i64: 1, 128>}, {pipeline_mode = #tpu.pipeline_mode<synchronous>, transform_indices = @transform_9, window_bounds = array<i64: 1, 128>}, {pipeline_mode = #tpu.pipeline_mode<synchronous>, transform_indices = @transform_10, window_bounds = array<i64: 1, 1>}, {transform_indices = @transform_11, window_bounds = array<i64: 8, 1>}]} {
    %c0 = arith.constant 0 : index
    %c0_0 = arith.constant 0 : index
    %0 = vector.load %arg1[%c0, %c0_0] : memref<8x384xf32, #tpu.memory_space<vmem>>, vector<8x384xf32>
    %1 = arith.truncf %0 : vector<8x384xf32> to vector<8x384xbf16>
    %c0_1 = arith.constant 0 : index
    %c0_2 = arith.constant 0 : index
    %2 = vector.load %arg2[%c0_1, %c0_2] : memref<8x128xf32, #tpu.memory_space<vmem>>, vector<8x128xf32>
    %3 = arith.truncf %2 : vector<8x128xf32> to vector<8x128xbf16>
    %c0_3 = arith.constant 0 : index
    %c0_4 = arith.constant 0 : index
    %4 = vector.load %arg3[%c0_3, %c0_4] : memref<384x128xbf16, #tpu.memory_space<vmem>>, vector<384x128xbf16>
    %cst = arith.constant dense<0.000000e+00> : vector<8x128xf32>
    %5 = tpu.matmul %1, %4, %cst {dimension_numbers = #tpu.dot_dimension_numbers<[1], [0], [0], [1], [0, 0, 1, 1], [], []>} : vector<8x384xbf16>, vector<384x128xbf16>, vector<8x128xf32> -> vector<8x128xf32>
    %c0_5 = arith.constant 0 : index
    %c0_6 = arith.constant 0 : index
    %6 = vector.load %arg4[%c0_5, %c0_6] : memref<1x128xf32, #tpu.memory_space<vmem>>, vector<1x128xf32>
    %7 = vector.broadcast %6 : vector<1x128xf32> to vector<8x128xf32>
    %8 = arith.addf %5, %7 : vector<8x128xf32>
    %cst_7 = arith.constant 0.000000e+00 : f32
    %9 = vector.broadcast %cst_7 : f32 to vector<8x128xf32>
    %10 = arith.maximumf %8, %9 : vector<8x128xf32>
    %c0_8 = arith.constant 0 : index
    %c0_9 = arith.constant 0 : index
    %11 = vector.load %arg5[%c0_8, %c0_9] : memref<128x128xbf16, #tpu.memory_space<vmem>>, vector<128x128xbf16>
    %cst_10 = arith.constant dense<0.000000e+00> : vector<8x128xf32>
    %12 = tpu.matmul %3, %11, %cst_10 {dimension_numbers = #tpu.dot_dimension_numbers<[1], [0], [0], [1], [0, 0, 1, 1], [], []>} : vector<8x128xbf16>, vector<128x128xbf16>, vector<8x128xf32> -> vector<8x128xf32>
    %c0_11 = arith.constant 0 : index
    %c0_12 = arith.constant 0 : index
    %13 = vector.load %arg6[%c0_11, %c0_12] : memref<1x128xf32, #tpu.memory_space<vmem>>, vector<1x128xf32>
    %14 = vector.broadcast %13 : vector<1x128xf32> to vector<8x128xf32>
    %15 = arith.addf %12, %14 : vector<8x128xf32>
    %cst_13 = arith.constant 0.000000e+00 : f32
    %16 = vector.broadcast %cst_13 : f32 to vector<8x128xf32>
    %17 = arith.maximumf %15, %16 : vector<8x128xf32>
    %18 = arith.truncf %10 : vector<8x128xf32> to vector<8x128xbf16>
    %c0_14 = arith.constant 0 : index
    %c0_15 = arith.constant 0 : index
    %19 = vector.load %arg7[%c0_14, %c0_15] : memref<128x128xbf16, #tpu.memory_space<vmem>>, vector<128x128xbf16>
    %cst_16 = arith.constant dense<0.000000e+00> : vector<8x128xf32>
    %20 = tpu.matmul %18, %19, %cst_16 {dimension_numbers = #tpu.dot_dimension_numbers<[1], [0], [0], [1], [0, 0, 1, 1], [], []>} : vector<8x128xbf16>, vector<128x128xbf16>, vector<8x128xf32> -> vector<8x128xf32>
    %21 = arith.truncf %17 : vector<8x128xf32> to vector<8x128xbf16>
    %c0_17 = arith.constant 0 : index
    %c0_18 = arith.constant 0 : index
    %22 = vector.load %arg8[%c0_17, %c0_18] : memref<128x128xbf16, #tpu.memory_space<vmem>>, vector<128x128xbf16>
    %cst_19 = arith.constant dense<0.000000e+00> : vector<8x128xf32>
    %23 = tpu.matmul %21, %22, %cst_19 {dimension_numbers = #tpu.dot_dimension_numbers<[1], [0], [0], [1], [0, 0, 1, 1], [], []>} : vector<8x128xbf16>, vector<128x128xbf16>, vector<8x128xf32> -> vector<8x128xf32>
    %24 = arith.addf %20, %23 : vector<8x128xf32>
    %c0_20 = arith.constant 0 : index
    %c0_21 = arith.constant 0 : index
    %25 = vector.load %arg9[%c0_20, %c0_21] : memref<1x128xf32, #tpu.memory_space<vmem>>, vector<1x128xf32>
    %26 = vector.broadcast %25 : vector<1x128xf32> to vector<8x128xf32>
    %27 = arith.addf %24, %26 : vector<8x128xf32>
    %cst_22 = arith.constant 0.000000e+00 : f32
    %28 = vector.broadcast %cst_22 : f32 to vector<8x128xf32>
    %29 = arith.maximumf %27, %28 : vector<8x128xf32>
    %c0_23 = arith.constant 0 : index
    %c0_24 = arith.constant 0 : index
    %30 = vector.load %arg10[%c0_23, %c0_24] : memref<1x128xf32, #tpu.memory_space<vmem>>, vector<1x128xf32>
    %31 = vector.broadcast %30 : vector<1x128xf32> to vector<8x128xf32>
    %32 = arith.mulf %29, %31 : vector<8x128xf32>
    %cst_25 = arith.constant dense<0.000000e+00> : vector<8xf32>
    %33 = vector.multi_reduction <add>, %32, %cst_25 [1] : vector<8x128xf32> to vector<8xf32>
    %34 = vector.shape_cast %33 : vector<8xf32> to vector<8x1xf32>
    %c0_26 = arith.constant 0 : index
    %c0_27 = arith.constant 0 : index
    %35 = vector.load %arg11[%c0_26, %c0_27] : memref<1x1xf32, #tpu.memory_space<vmem>>, vector<1x1xf32>
    %36 = vector.broadcast %35 : vector<1x1xf32> to vector<8x1xf32>
    %37 = arith.addf %34, %36 : vector<8x1xf32>
    %c0_28 = arith.constant 0 : index
    %c0_29 = arith.constant 0 : index
    %38 = vector.load %arg12[%c0_28, %c0_29] : memref<8x1xf32, #tpu.memory_space<vmem>>, vector<8x1xf32>
    tpu.vector_store %arg12[%c0_28, %c0_29], %37 {strides = array<i32>} : memref<8x1xf32, #tpu.memory_space<vmem>>, vector<8x1xf32>,
    return
  }
  func.func @transform_0(%arg0: i32) -> (i32, i32) {
    %c0_i32 = arith.constant 0 : i32
    %c0_i32_0 = arith.constant 0 : i32
    return %arg0, %c0_i32 : i32, i32
  }
  func.func @transform_1(%arg0: i32) -> (i32, i32) {
    %c0_i32 = arith.constant 0 : i32
    %c0_i32_0 = arith.constant 0 : i32
    return %arg0, %c0_i32 : i32, i32
  }
  func.func @transform_2(%arg0: i32) -> (i32, i32) {
    %c0_i32 = arith.constant 0 : i32
    %c0_i32_0 = arith.constant 0 : i32
    %c0_i32_1 = arith.constant 0 : i32
    return %c0_i32, %c0_i32_0 : i32, i32
  }
  func.func @transform_3(%arg0: i32) -> (i32, i32) {
    %c0_i32 = arith.constant 0 : i32
    %c0_i32_0 = arith.constant 0 : i32
    %c0_i32_1 = arith.constant 0 : i32
    return %c0_i32, %c0_i32_0 : i32, i32
  }
  func.func @transform_4(%arg0: i32) -> (i32, i32) {
    %c0_i32 = arith.constant 0 : i32
    %c0_i32_0 = arith.constant 0 : i32
    %c0_i32_1 = arith.constant 0 : i32
    return %c0_i32, %c0_i32_0 : i32, i32
  }
  func.func @transform_5(%arg0: i32) -> (i32, i32) {
    %c0_i32 = arith.constant 0 : i32
    %c0_i32_0 = arith.constant 0 : i32
    %c0_i32_1 = arith.constant 0 : i32
    return %c0_i32, %c0_i32_0 : i32, i32
  }
  func.func @transform_6(%arg0: i32) -> (i32, i32) {
    %c0_i32 = arith.constant 0 : i32
    %c0_i32_0 = arith.constant 0 : i32
    %c0_i32_1 = arith.constant 0 : i32
    return %c0_i32, %c0_i32_0 : i32, i32
  }
  func.func @transform_7(%arg0: i32) -> (i32, i32) {
    %c0_i32 = arith.constant 0 : i32
    %c0_i32_0 = arith.constant 0 : i32
    %c0_i32_1 = arith.constant 0 : i32
    return %c0_i32, %c0_i32_0 : i32, i32
  }
  func.func @transform_8(%arg0: i32) -> (i32, i32) {
    %c0_i32 = arith.constant 0 : i32
    %c0_i32_0 = arith.constant 0 : i32
    %c0_i32_1 = arith.constant 0 : i32
    return %c0_i32, %c0_i32_0 : i32, i32
  }
  func.func @transform_9(%arg0: i32) -> (i32, i32) {
    %c0_i32 = arith.constant 0 : i32
    %c0_i32_0 = arith.constant 0 : i32
    %c0_i32_1 = arith.constant 0 : i32
    return %c0_i32, %c0_i32_0 : i32, i32
  }
  func.func @transform_10(%arg0: i32) -> (i32, i32) {
    %c0_i32 = arith.constant 0 : i32
    %c0_i32_0 = arith.constant 0 : i32
    %c0_i32_1 = arith.constant 0 : i32
    return %c0_i32, %c0_i32_0 : i32, i32
  }
  func.func @transform_11(%arg0: i32) -> (i32, i32) {
    %c0_i32 = arith.constant 0 : i32
    %c0_i32_0 = arith.constant 0 : i32
    return %arg0, %c0_i32 : i32, i32
  }
}

</mosaic_0001>

<llo_original>
// kernel: tpu_custom_call.1
$region0: #{tpu_custom_call.1}
  #allocation0 [shape = 'u32[]', space=smem, size = 0x4, offset = 0x4, fixed_abs, tag = 'smem constant byte address 0x4 - core index']
  #allocation1 [shape = 'u32[72,128]{1,0:T(1,128)}', space=vmem, size = 0x9000, scoped, tag = 'internal scratch']
  #allocation2 [shape = 'f32[1,1]{1,0:T(1,128)S(1)}', space=vmem, size = 0x200, scoped, tag = 'scoped memory for tpu_custom_call.1']
  %s0 = inlined_call_operand.hbm [shape: f32[16,384], index: 0, kind: input, shape index: {}]
  %s1 = inlined_call_operand.hbm [shape: f32[16,128], index: 1, kind: input, shape index: {}]
  %s2 = inlined_call_operand.hbm [shape: bf16[384,128], index: 2, kind: input, shape index: {}]
  %s3 = inlined_call_operand.vmem [shape: f32[1,128], index: 3, kind: input, shape index: {}]
  %s4 = inlined_call_operand.hbm [shape: bf16[128,128], index: 4, kind: input, shape index: {}]
  %s5 = inlined_call_operand.vmem [shape: f32[1,128], index: 5, kind: input, shape index: {}]
  %s6 = inlined_call_operand.hbm [shape: bf16[128,128], index: 6, kind: input, shape index: {}]
  %s7 = inlined_call_operand.hbm [shape: bf16[128,128], index: 7, kind: input, shape index: {}]
  %s8 = inlined_call_operand.vmem [shape: f32[1,128], index: 8, kind: input, shape index: {}]
  %s9 = inlined_call_operand.vmem [shape: f32[1,128], index: 9, kind: input, shape index: {}]
  %s10 = inlined_call_operand.<no memory space> [shape: f32[1,1], index: 10, kind: input, shape index: {}]
  %s11 = inlined_call_operand.vmem [shape: f32[16,1], index: 11, kind: output, shape index: {}]
  %s12 = sld [smem:[#allocation0]]
  $region101: #{tpu_custom_call.1} parent=0
    _
  %s14 = ssub.s32 1, %s12
  %s15 = scalar_select 0, %s14, %s12
  %v16 = vstv %s10
  %17 = vst [vmem:[#allocation2] sm:$0x1] %v16
  $region1: #{tpu_custom_call.1} parent=0
    #allocation3 [shape = 'u8[24576]{0}', space=vmem, size = 0x6000, scoped, tag = 'input window, operand 0']
    #allocation4 [shape = 's32[2]{0}', space=sflag, size = 0x8, scoped, tag = 'scoped memory for tpu_custom_call.1']
    #allocation5 [shape = 'u8[8192]{0}', space=vmem, size = 0x2000, scoped, tag = 'input window, operand 1']
    #allocation6 [shape = 's32[2]{0}', space=sflag, size = 0x8, scoped, tag = 'scoped memory for tpu_custom_call.1']
    #allocation7 [shape = 'u8[98304]{0}', space=vmem, size = 0x18000, scoped, tag = 'input window, operand 2, single buffered']
    #allocation8 [shape = 'u8[32768]{0}', space=vmem, size = 0x8000, scoped, tag = 'input window, operand 4, single buffered']
    #allocation9 [shape = 's32[1]{0}', space=sflag, size = 0x4, scoped, tag = 'scoped memory for tpu_custom_call.1']
    #allocation10 [shape = 'u8[32768]{0}', space=vmem, size = 0x8000, scoped, tag = 'input window, operand 6, single buffered']
    #allocation11 [shape = 'u8[32768]{0}', space=vmem, size = 0x8000, scoped, tag = 'input window, operand 7, single buffered']
    #allocation12 [shape = 's32[1]{0}', space=sflag, size = 0x4, scoped, tag = 'scoped memory for tpu_custom_call.1']
    %18 = vsyncpa [#allocation4], 0
    %s19 = scalar_lea.sflag [#allocation4], 1
    %20 = vsyncpa %s19, 0
    %21 = vsyncpa [#allocation6], 0
    %s22 = scalar_lea.sflag [#allocation6], 1
    %23 = vsyncpa %s22, 0
    %24 = vsyncpa [#allocation9], 0
    %25 = vsyncpa [#allocation12], 0
    loop: start=0, step=1, limit=4
    $region2: #{tpu_custom_call.1} parent=1 // loop_pre_header
      _
    $region3: #{tpu_custom_call.1} parent=1 // loop_header
      %s27 = sphi 0, %s31
      %p28 = scmp.ge.s32.totalorder %s27, 4
      %s37 = sphi 0, %s39
      %s40 = sphi 0, %s37
      %s41 = sphi 0, %s40
      %s57 = sphi 0, %s41
      %s63 = sphi 0, %s65
      %s66 = sphi 0, %s63
      %s67 = sphi 0, %s66
      %s83 = sphi 0, %s67
      %s87 = sphi 0, %s87
      %s89 = sphi 0, %s87
      %s90 = sphi 0, %s89
      %s104 = sphi 0, %s90
      %s108 = sphi 0, %s108
      %s110 = sphi 0, %s108
      %s111 = sphi 0, %s110
      %s125 = sphi 0, %s111
      %s129 = sphi 0, %s129
      %s131 = sphi 0, %s129
      %s132 = sphi 0, %s131
      %s146 = sphi 0, %s132
      %s150 = sphi 0, %s150
      %s152 = sphi 0, %s150
      %s153 = sphi 0, %s152
      %s167 = sphi 0, %s153
      %s171 = sphi 0, %s171
      %s173 = sphi 0, %s171
      %s174 = sphi 0, %s173
      %s188 = sphi 0, %s174
      %s192 = sphi 0, %s192
      %s194 = sphi 0, %s192
      %s195 = sphi 0, %s194
      %s209 = sphi 0, %s195
      %s213 = sphi 0, %s213
      %s215 = sphi 0, %s213
      %s216 = sphi 0, %s215
      %s230 = sphi 0, %s216
      %s234 = sphi 0, %s234
      %s236 = sphi 0, %s234
      %s237 = sphi 0, %s236
      %s251 = sphi 0, %s237
      %s255 = sphi 0, %s255
      %s257 = sphi 0, %s255
      %s258 = sphi 0, %s257
      %s272 = sphi 0, %s258
      %s278 = sphi 0, %s280
      %s281 = sphi 0, %s278
      %s282 = sphi 0, %s281
      %s298 = sphi 0, %s282
    $region4: #{tpu_custom_call.1} parent=1 // loop_header_branch
      %30 = sbr.rel (%p28) target = $region8
    $region5: #{tpu_custom_call.1} parent=1 // loop_body
      %s32 = ssub.s32 %s27, 1
      %s33 = ssub.s32 %s27, 2
      %s34 = sadd.s32 %s27, 1
      %s35 = ssub.s32 %s27, %s34
      %p36 = scmp.eq.s32.totalorder %s35, 0
      %s38 = sadd.s32 %s37, 1
      %s39 = scalar_select %p36, %s37, %s38
      %p42 = pneg %p36
      %p43 = scmp.eq.s32.totalorder %s27, 1
      %p44 = por %p42, %p43
      %p45 = scmp.ne.s32.totalorder %s37, %s40
      %p46 = scmp.eq.s32.totalorder %s27, 0
      %p47 = por %p45, %p46
      %p48 = scmp.ne.s32.totalorder %s37, %s40
      %p49 = scmp.eq.s32.totalorder %s32, 1
      %p50 = por %p48, %p49
      %p51 = scmp.ne.s32.totalorder %s40, %s41
      %p52 = scmp.eq.s32.totalorder %s32, 0
      %p53 = por %p51, %p52
      %p54 = scmp.ne.s32.totalorder %s40, %s41
      %p55 = scmp.eq.s32.totalorder %s33, 1
      %p56 = por %p54, %p55
      %p58 = scmp.ne.s32.totalorder %s41, %s57
      %p59 = scmp.eq.s32.totalorder %s33, 0
      %p60 = por %p58, %p59
      %s61 = ssub.s32 %s27, %s34
      %p62 = scmp.eq.s32.totalorder %s61, 0
      %s64 = sadd.s32 %s63, 1
      %s65 = scalar_select %p62, %s63, %s64
      %p68 = pneg %p62
      %p69 = scmp.eq.s32.totalorder %s27, 1
      %p70 = por %p68, %p69
      %p71 = scmp.ne.s32.totalorder %s63, %s66
      %p72 = scmp.eq.s32.totalorder %s27, 0
      %p73 = por %p71, %p72
      %p74 = scmp.ne.s32.totalorder %s63, %s66
      %p75 = scmp.eq.s32.totalorder %s32, 1
      %p76 = por %p74, %p75
      %p77 = scmp.ne.s32.totalorder %s66, %s67
      %p78 = scmp.eq.s32.totalorder %s32, 0
      %p79 = por %p77, %p78
      %p80 = scmp.ne.s32.totalorder %s66, %s67
      %p81 = scmp.eq.s32.totalorder %s33, 1
      %p82 = por %p80, %p81
      %p84 = scmp.ne.s32.totalorder %s67, %s83
      %p85 = scmp.eq.s32.totalorder %s33, 0
      %p86 = por %p84, %p85
      %s88 = sadd.s32 %s87, 1
      %p91 = scmp.eq.s32.totalorder %s27, 1
      %p92 = scmp.ne.s32.totalorder %s87, %s89
      %p93 = scmp.eq.s32.totalorder %s27, 0
      %p94 = por %p92, %p93
      %p95 = scmp.ne.s32.totalorder %s87, %s89
      %p96 = scmp.eq.s32.totalorder %s32, 1
      %p97 = por %p95, %p96
      %p98 = scmp.ne.s32.totalorder %s89, %s90
      %p99 = scmp.eq.s32.totalorder %s32, 0
      %p100 = por %p98, %p99
      %p101 = scmp.ne.s32.totalorder %s89, %s90
      %p102 = scmp.eq.s32.totalorder %s33, 1
      %p103 = por %p101, %p102
      %p105 = scmp.ne.s32.totalorder %s90, %s104
      %p106 = scmp.eq.s32.totalorder %s33, 0
      %p107 = por %p105, %p106
      %s109 = sadd.s32 %s108, 1
      %p112 = scmp.eq.s32.totalorder %s27, 1
      %p113 = scmp.ne.s32.totalorder %s108, %s110
      %p114 = scmp.eq.s32.totalorder %s27, 0
      %p115 = por %p113, %p114
      %p116 = scmp.ne.s32.totalorder %s108, %s110
      %p117 = scmp.eq.s32.totalorder %s32, 1
      %p118 = por %p116, %p117
      %p119 = scmp.ne.s32.totalorder %s110, %s111
      %p120 = scmp.eq.s32.totalorder %s32, 0
      %p121 = por %p119, %p120
      %p122 = scmp.ne.s32.totalorder %s110, %s111
      %p123 = scmp.eq.s32.totalorder %s33, 1
      %p124 = por %p122, %p123
      %p126 = scmp.ne.s32.totalorder %s111, %s125
      %p127 = scmp.eq.s32.totalorder %s33, 0
      %p128 = por %p126, %p127
      %s130 = sadd.s32 %s129, 1
      %p133 = scmp.eq.s32.totalorder %s27, 1
      %p134 = scmp.ne.s32.totalorder %s129, %s131
      %p135 = scmp.eq.s32.totalorder %s27, 0
      %p136 = por %p134, %p135
      %p137 = scmp.ne.s32.totalorder %s129, %s131
      %p138 = scmp.eq.s32.totalorder %s32, 1
      %p139 = por %p137, %p138
      %p140 = scmp.ne.s32.totalorder %s131, %s132
      %p141 = scmp.eq.s32.totalorder %s32, 0
      %p142 = por %p140, %p141
      %p143 = scmp.ne.s32.totalorder %s131, %s132
      %p144 = scmp.eq.s32.totalorder %s33, 1
      %p145 = por %p143, %p144
      %p147 = scmp.ne.s32.totalorder %s132, %s146
      %p148 = scmp.eq.s32.totalorder %s33, 0
      %p149 = por %p147, %p148
      %s151 = sadd.s32 %s150, 1
      %p154 = scmp.eq.s32.totalorder %s27, 1
      %p155 = scmp.ne.s32.totalorder %s150, %s152
      %p156 = scmp.eq.s32.totalorder %s27, 0
      %p157 = por %p155, %p156
      %p158 = scmp.ne.s32.totalorder %s150, %s152
      %p159 = scmp.eq.s32.totalorder %s32, 1
      %p160 = por %p158, %p159
      %p161 = scmp.ne.s32.totalorder %s152, %s153
      %p162 = scmp.eq.s32.totalorder %s32, 0
      %p163 = por %p161, %p162
      %p164 = scmp.ne.s32.totalorder %s152, %s153
      %p165 = scmp.eq.s32.totalorder %s33, 1
      %p166 = por %p164, %p165
      %p168 = scmp.ne.s32.totalorder %s153, %s167
      %p169 = scmp.eq.s32.totalorder %s33, 0
      %p170 = por %p168, %p169
      %s172 = sadd.s32 %s171, 1
      %p175 = scmp.eq.s32.totalorder %s27, 1
      %p176 = scmp.ne.s32.totalorder %s171, %s173
      %p177 = scmp.eq.s32.totalorder %s27, 0
      %p178 = por %p176, %p177
      %p179 = scmp.ne.s32.totalorder %s171, %s173
      %p180 = scmp.eq.s32.totalorder %s32, 1
      %p181 = por %p179, %p180
      %p182 = scmp.ne.s32.totalorder %s173, %s174
      %p183 = scmp.eq.s32.totalorder %s32, 0
      %p184 = por %p182, %p183
      %p185 = scmp.ne.s32.totalorder %s173, %s174
      %p186 = scmp.eq.s32.totalorder %s33, 1
      %p187 = por %p185, %p186
      %p189 = scmp.ne.s32.totalorder %s174, %s188
      %p190 = scmp.eq.s32.totalorder %s33, 0
      %p191 = por %p189, %p190
      %s193 = sadd.s32 %s192, 1
      %p196 = scmp.eq.s32.totalorder %s27, 1
      %p197 = scmp.ne.s32.totalorder %s192, %s194
      %p198 = scmp.eq.s32.totalorder %s27, 0
      %p199 = por %p197, %p198
      %p200 = scmp.ne.s32.totalorder %s192, %s194
      %p201 = scmp.eq.s32.totalorder %s32, 1
      %p202 = por %p200, %p201
      %p203 = scmp.ne.s32.totalorder %s194, %s195
      %p204 = scmp.eq.s32.totalorder %s32, 0
      %p205 = por %p203, %p204
      %p206 = scmp.ne.s32.totalorder %s194, %s195
      %p207 = scmp.eq.s32.totalorder %s33, 1
      %p208 = por %p206, %p207
      %p210 = scmp.ne.s32.totalorder %s195, %s209
      %p211 = scmp.eq.s32.totalorder %s33, 0
      %p212 = por %p210, %p211
      %s214 = sadd.s32 %s213, 1
      %p217 = scmp.eq.s32.totalorder %s27, 1
      %p218 = scmp.ne.s32.totalorder %s213, %s215
      %p219 = scmp.eq.s32.totalorder %s27, 0
      %p220 = por %p218, %p219
      %p221 = scmp.ne.s32.totalorder %s213, %s215
      %p222 = scmp.eq.s32.totalorder %s32, 1
      %p223 = por %p221, %p222
      %p224 = scmp.ne.s32.totalorder %s215, %s216
      %p225 = scmp.eq.s32.totalorder %s32, 0
      %p226 = por %p224, %p225
      %p227 = scmp.ne.s32.totalorder %s215, %s216
      %p228 = scmp.eq.s32.totalorder %s33, 1
      %p229 = por %p227, %p228
      %p231 = scmp.ne.s32.totalorder %s216, %s230
      %p232 = scmp.eq.s32.totalorder %s33, 0
      %p233 = por %p231, %p232
      %s235 = sadd.s32 %s234, 1
      %p238 = scmp.eq.s32.totalorder %s27, 1
      %p239 = scmp.ne.s32.totalorder %s234, %s236
      %p240 = scmp.eq.s32.totalorder %s27, 0
      %p241 = por %p239, %p240
      %p242 = scmp.ne.s32.totalorder %s234, %s236
      %p243 = scmp.eq.s32.totalorder %s32, 1
      %p244 = por %p242, %p243
      %p245 = scmp.ne.s32.totalorder %s236, %s237
      %p246 = scmp.eq.s32.totalorder %s32, 0
      %p247 = por %p245, %p246
      %p248 = scmp.ne.s32.totalorder %s236, %s237
      %p249 = scmp.eq.s32.totalorder %s33, 1
      %p250 = por %p248, %p249
      %p252 = scmp.ne.s32.totalorder %s237, %s251
      %p253 = scmp.eq.s32.totalorder %s33, 0
      %p254 = por %p252, %p253
      %s256 = sadd.s32 %s255, 1
      %p259 = scmp.eq.s32.totalorder %s27, 1
      %p260 = scmp.ne.s32.totalorder %s255, %s257
      %p261 = scmp.eq.s32.totalorder %s27, 0
      %p262 = por %p260, %p261
      %p263 = scmp.ne.s32.totalorder %s255, %s257
      %p264 = scmp.eq.s32.totalorder %s32, 1
      %p265 = por %p263, %p264
      %p266 = scmp.ne.s32.totalorder %s257, %s258
      %p267 = scmp.eq.s32.totalorder %s32, 0
      %p268 = por %p266, %p267
      %p269 = scmp.ne.s32.totalorder %s257, %s258
      %p270 = scmp.eq.s32.totalorder %s33, 1
      %p271 = por %p269, %p270
      %p273 = scmp.ne.s32.totalorder %s258, %s272
      %p274 = scmp.eq.s32.totalorder %s33, 0
      %p275 = por %p273, %p274
      %s276 = ssub.s32 %s27, %s34
      %p277 = scmp.eq.s32.totalorder %s276, 0
      %s279 = sadd.s32 %s278, 1
      %s280 = scalar_select %p277, %s278, %s279
      %p283 = pneg %p277
      %p284 = scmp.eq.s32.totalorder %s27, 1
      %p285 = por %p283, %p284
      %p286 = scmp.ne.s32.totalorder %s278, %s281
      %p287 = scmp.eq.s32.totalorder %s27, 0
      %p288 = por %p286, %p287
      %p289 = scmp.ne.s32.totalorder %s278, %s281
      %p290 = scmp.eq.s32.totalorder %s32, 1
      %p291 = por %p289, %p290
      %p292 = scmp.ne.s32.totalorder %s281, %s282
      %p293 = scmp.eq.s32.totalorder %s32, 0
      %p294 = por %p292, %p293
      %p295 = scmp.ne.s32.totalorder %s281, %s282
      %p296 = scmp.eq.s32.totalorder %s33, 1
      %p297 = por %p295, %p296
      %p299 = scmp.ne.s32.totalorder %s282, %s298
      %p300 = scmp.eq.s32.totalorder %s33, 0
      %p301 = por %p299, %p300
      %p302 = scmp.le.s32.totalorder 1, %s27
      %p303 = scmp.lt.s32.totalorder %s27, 3
      %p304 = pnand %p302, %p303
      %p305 = pneg %p304
      // Predicated region
      $region9: #{tpu_custom_call.1} parent=5 // pred_check
        _
      $region10: #{tpu_custom_call.1} parent=5 // pred_check_branch
        %307 = sbr.rel (%p304) target = $region12
      $region11: #{tpu_custom_call.1} parent=5 // pred_region
        %s308 = ssub.s32 %s27, 1
        // Predicated region
        $region13: #{tpu_custom_call.1} parent=11 // pred_check
          %p309 = pneg %p100
        $region14: #{tpu_custom_call.1} parent=11 // pred_check_branch
          %311 = sbr.rel (%p309) target = $region16
        $region15: #{tpu_custom_call.1} parent=11 // pred_region
          %313 = vsyncadd [#allocation6], 0
          %s314 = sshll.u32 %s2, 4
          %s315 = int_to_ptr.hbm [resolvable:$true] %s314
          %s316 = sshll.u32 [#allocation7], 4
          %s317 = int_to_ptr.vmem [resolvable:$true] %s316
          %322 = dma.hbm_to_vmem [thread:$0]  %s315, 3072, %s317, [#allocation6], 64, 64, 4
        $region16: #{tpu_custom_call.1} parent=11 // pred_fallthru
          _
        // Predicated region
        $region17: #{tpu_custom_call.1} parent=11 // pred_check
          %p323 = pneg %p121
        $region18: #{tpu_custom_call.1} parent=11 // pred_check_branch
          %325 = sbr.rel (%p323) target = $region20
        $region19: #{tpu_custom_call.1} parent=11 // pred_region
          _
        $region20: #{tpu_custom_call.1} parent=11 // pred_fallthru
          _
        // Predicated region
        $region21: #{tpu_custom_call.1} parent=11 // pred_check
          %p326 = pneg %p142
        $region22: #{tpu_custom_call.1} parent=11 // pred_check_branch
          %328 = sbr.rel (%p326) target = $region24
        $region23: #{tpu_custom_call.1} parent=11 // pred_region
          %330 = vsyncadd [#allocation9], 0
          %s331 = sshll.u32 %s4, 4
          %s332 = int_to_ptr.hbm [resolvable:$true] %s331
          %s333 = sshll.u32 [#allocation8], 4
          %s334 = int_to_ptr.vmem [resolvable:$true] %s333
          %339 = dma.hbm_to_vmem [thread:$0]  %s332, 1024, %s334, [#allocation9], 64, 64, 4
        $region24: #{tpu_custom_call.1} parent=11 // pred_fallthru
          _
        // Predicated region
        $region25: #{tpu_custom_call.1} parent=11 // pred_check
          %p340 = pneg %p163
        $region26: #{tpu_custom_call.1} parent=11 // pred_check_branch
          %342 = sbr.rel (%p340) target = $region28
        $region27: #{tpu_custom_call.1} parent=11 // pred_region
          _
        $region28: #{tpu_custom_call.1} parent=11 // pred_fallthru
          _
        // Predicated region
        $region29: #{tpu_custom_call.1} parent=11 // pred_check
          %p343 = pneg %p184
        $region30: #{tpu_custom_call.1} parent=11 // pred_check_branch
          %345 = sbr.rel (%p343) target = $region32
        $region31: #{tpu_custom_call.1} parent=11 // pred_region
          %347 = vsyncadd [#allocation9], 0
          %s348 = sshll.u32 %s6, 4
          %s349 = int_to_ptr.hbm [resolvable:$true] %s348
          %s350 = sshll.u32 [#allocation10], 4
          %s351 = int_to_ptr.vmem [resolvable:$true] %s350
          %356 = dma.hbm_to_vmem [thread:$0]  %s349, 1024, %s351, [#allocation9], 64, 64, 4
        $region32: #{tpu_custom_call.1} parent=11 // pred_fallthru
          _
        // Predicated region
        $region33: #{tpu_custom_call.1} parent=11 // pred_check
          %p357 = pneg %p205
        $region34: #{tpu_custom_call.1} parent=11 // pred_check_branch
          %359 = sbr.rel (%p357) target = $region36
        $region35: #{tpu_custom_call.1} parent=11 // pred_region
          %361 = vsyncadd [#allocation12], 0
          %s362 = sshll.u32 %s7, 4
          %s363 = int_to_ptr.hbm [resolvable:$true] %s362
          %s364 = sshll.u32 [#allocation11], 4
          %s365 = int_to_ptr.vmem [resolvable:$true] %s364
          %370 = dma.hbm_to_vmem [thread:$0]  %s363, 1024, %s365, [#allocation12], 64, 64, 4
        $region36: #{tpu_custom_call.1} parent=11 // pred_fallthru
          _
        // Predicated region
        $region37: #{tpu_custom_call.1} parent=11 // pred_check
          %p371 = pneg %p226
        $region38: #{tpu_custom_call.1} parent=11 // pred_check_branch
          %373 = sbr.rel (%p371) target = $region40
        $region39: #{tpu_custom_call.1} parent=11 // pred_region
          _
        $region40: #{tpu_custom_call.1} parent=11 // pred_fallthru
          _
        // Predicated region
        $region41: #{tpu_custom_call.1} parent=11 // pred_check
          %p374 = pneg %p247
        $region42: #{tpu_custom_call.1} parent=11 // pred_check_branch
          %376 = sbr.rel (%p374) target = $region44
        $region43: #{tpu_custom_call.1} parent=11 // pred_region
          _
        $region44: #{tpu_custom_call.1} parent=11 // pred_fallthru
          _
        // Predicated region
        $region45: #{tpu_custom_call.1} parent=11 // pred_check
          %p377 = pneg %p268
        $region46: #{tpu_custom_call.1} parent=11 // pred_check_branch
          %379 = sbr.rel (%p377) target = $region48
        $region47: #{tpu_custom_call.1} parent=11 // pred_region
          _
        $region48: #{tpu_custom_call.1} parent=11 // pred_fallthru
          _
      $region12: #{tpu_custom_call.1} parent=5 // pred_fallthru
        _
      %p380 = scmp.lt.s32.totalorder %s27, 2
      // Predicated region
      $region49: #{tpu_custom_call.1} parent=5 // pred_check
        %p381 = pneg %p380
      $region50: #{tpu_custom_call.1} parent=5 // pred_check_branch
        %383 = sbr.rel (%p381) target = $region52
      $region51: #{tpu_custom_call.1} parent=5 // pred_region
        // Predicated region
        $region53: #{tpu_custom_call.1} parent=51 // pred_check
          %p384 = pneg %p47
        $region54: #{tpu_custom_call.1} parent=51 // pred_check_branch
          %386 = sbr.rel (%p384) target = $region56
        $region55: #{tpu_custom_call.1} parent=51 // pred_region
          %s387 = sand.u32 %s37, 1
          %s388 = scalar_lea.sflag [#allocation4], %s387
          %s389 = sand.u32 %s37, 1
          %s390 = smul.addr %s389, 24
          %s391 = scalar_lea.vmem [#allocation3], %s390
          %393 = vsyncadd %s388, 0
          %s394 = smul.addr %s27, 3
          %s395 = smul.addr %s394, 8
          %s396 = scalar_lea.hbm %s0, %s395
          %s398 = sshll.u32 %s396, 4
          %s399 = int_to_ptr.hbm [resolvable:$true] %s398
          %s400 = sshll.u32 %s391, 4
          %s401 = int_to_ptr.vmem [resolvable:$true] %s400
          %403 = dma.hbm_to_vmem [thread:$0]  %s399, 384, %s401, %s388
        $region56: #{tpu_custom_call.1} parent=51 // pred_fallthru
          _
        // Predicated region
        $region57: #{tpu_custom_call.1} parent=51 // pred_check
          %p404 = pneg %p73
        $region58: #{tpu_custom_call.1} parent=51 // pred_check_branch
          %406 = sbr.rel (%p404) target = $region60
        $region59: #{tpu_custom_call.1} parent=51 // pred_region
          %s407 = sand.u32 %s27, 1
          %s408 = scalar_lea.sflag [#allocation6], %s407
          %s409 = sand.u32 %s63, 1
          %s410 = smul.addr %s409, 8
          %s411 = scalar_lea.vmem [#allocation5], %s410
          %413 = vsyncadd %s408, 0
          %s414 = smul.addr %s27, 8
          %s415 = scalar_lea.hbm %s1, %s414
          %s417 = sshll.u32 %s415, 4
          %s418 = int_to_ptr.hbm [resolvable:$true] %s417
          %s419 = sshll.u32 %s411, 4
          %s420 = int_to_ptr.vmem [resolvable:$true] %s419
          %422 = dma.hbm_to_vmem [thread:$0]  %s418, 128, %s420, %s408
        $region60: #{tpu_custom_call.1} parent=51 // pred_fallthru
          _
      $region52: #{tpu_custom_call.1} parent=5 // pred_fallthru
        _
      %p423 = scmp.le.s32.totalorder 1, %s27
      %p424 = scmp.lt.s32.totalorder %s27, 3
      %p425 = pnand %p423, %p424
      %p426 = pneg %p425
      // Predicated region
      $region61: #{tpu_custom_call.1} parent=5 // pred_check
        _
      $region62: #{tpu_custom_call.1} parent=5 // pred_check_branch
        %428 = sbr.rel (%p425) target = $region64
      $region63: #{tpu_custom_call.1} parent=5 // pred_region
        %s429 = ssub.s32 %s27, 1
        %s430 = sand.u32 %s40, 1
        %s431 = scalar_lea.sflag [#allocation4], %s430
        %s432 = sand.u32 %s40, 1
        %s433 = smul.addr %s432, 24
        %s434 = scalar_lea.vmem [#allocation3], %s433
        // Predicated region
        $region65: #{tpu_custom_call.1} parent=63 // pred_check
          %p435 = pneg %p53
        $region66: #{tpu_custom_call.1} parent=63 // pred_check_branch
          %437 = sbr.rel (%p435) target = $region68
        $region67: #{tpu_custom_call.1} parent=63 // pred_region
          %439 = dma.done %s431, 384
        $region68: #{tpu_custom_call.1} parent=63 // pred_fallthru
          _
        %s440 = sand.u32 %s32, 1
        %s441 = scalar_lea.sflag [#allocation6], %s440
        %s442 = sand.u32 %s66, 1
        %s443 = smul.addr %s442, 8
        %s444 = scalar_lea.vmem [#allocation5], %s443
        // Predicated region
        $region69: #{tpu_custom_call.1} parent=63 // pred_check
          %p445 = pneg %p79
        $region70: #{tpu_custom_call.1} parent=63 // pred_check_branch
          %447 = sbr.rel (%p445) target = $region72
        $region71: #{tpu_custom_call.1} parent=63 // pred_region
          %449 = dma.done %s441, 128
        $region72: #{tpu_custom_call.1} parent=63 // pred_fallthru
          _
        // Predicated region
        $region73: #{tpu_custom_call.1} parent=63 // pred_check
          %p450 = pneg %p100
        $region74: #{tpu_custom_call.1} parent=63 // pred_check_branch
          %452 = sbr.rel (%p450) target = $region76
        $region75: #{tpu_custom_call.1} parent=63 // pred_region
          %454 = dma.done [#allocation6], 3072
        $region76: #{tpu_custom_call.1} parent=63 // pred_fallthru
          _
        // Predicated region
        $region77: #{tpu_custom_call.1} parent=63 // pred_check
          %p455 = pneg %p142
        $region78: #{tpu_custom_call.1} parent=63 // pred_check_branch
          %457 = sbr.rel (%p455) target = $region80
        $region79: #{tpu_custom_call.1} parent=63 // pred_region
          %459 = dma.done [#allocation9], 1024
        $region80: #{tpu_custom_call.1} parent=63 // pred_fallthru
          _
        // Predicated region
        $region81: #{tpu_custom_call.1} parent=63 // pred_check
          %p460 = pneg %p184
        $region82: #{tpu_custom_call.1} parent=63 // pred_check_branch
          %462 = sbr.rel (%p460) target = $region84
        $region83: #{tpu_custom_call.1} parent=63 // pred_region
          %464 = dma.done [#allocation9], 1024
        $region84: #{tpu_custom_call.1} parent=63 // pred_fallthru
          _
        // Predicated region
        $region85: #{tpu_custom_call.1} parent=63 // pred_check
          %p465 = pneg %p205
        $region86: #{tpu_custom_call.1} parent=63 // pred_check_branch
          %467 = sbr.rel (%p465) target = $region88
        $region87: #{tpu_custom_call.1} parent=63 // pred_region
          %469 = dma.done [#allocation12], 1024
        $region88: #{tpu_custom_call.1} parent=63 // pred_fallthru
          _
        %s470 = sand.u32 %s40, 1
        %s471 = scalar_lea.sflag [#allocation4], %s470
        %s472 = sand.u32 %s40, 1
        %s473 = smul.addr %s472, 24
        %s474 = scalar_lea.vmem [#allocation3], %s473
        %p475 = pneg %p53
        %p476 = pneg %p50
        %s477 = sand.u32 %s32, 1
        %s478 = scalar_lea.sflag [#allocation6], %s477
        %s479 = sand.u32 %s66, 1
        %s480 = smul.addr %s479, 8
        %s481 = scalar_lea.vmem [#allocation5], %s480
        %p482 = pneg %p79
        %p483 = pneg %p76
        %p484 = pneg %p100
        %p485 = pneg %p97
        %p486 = pneg %p121
        %p487 = pneg %p118
        %p488 = pneg %p142
        %p489 = pneg %p139
        %p490 = pneg %p163
        %p491 = pneg %p160
        %p492 = pneg %p184
        %p493 = pneg %p181
        %p494 = pneg %p205
        %p495 = pneg %p202
        %p496 = pneg %p226
        %p497 = pneg %p223
        %p498 = pneg %p247
        %p499 = pneg %p244
        %p500 = pneg %p268
        %p501 = pneg %p265
        %p502 = pneg %p294
        %p503 = pneg %p291
        %p504 = scmp.lt.s32.totalorder %s32, 1
        %s505 = scalar_select %p504, %s32, 1
        %s506 = smul.addr %s505, 8
        %s507 = scalar_lea.vmem %s11, %s506
        %p508 = scmp.lt.s32.totalorder %s32, 1
        %s509 = scalar_select %p508, %s32, 1
        %s510 = smul.addr %s509, 8
        %s511 = scalar_lea.vmem %s11, %s510
        %v512 = vld [vmem:[%s434] sm:$0xff]
        %v513 = vld [vmem:[%s434 + $0x8] sm:$0xff]
        %v514 = vld [vmem:[%s434 + $0x10] sm:$0xff]
        %v515 = vpack.c.bf16 %v512, %v512
        %v516 = vpack.c.bf16 %v513, %v513
        %v517 = vpack.c.bf16 %v514, %v514
        %v518 = vld [vmem:[%s444] sm:$0xff]
        %v519 = vpack.c.bf16 %v518, %v518
        %v520 = vld [vmem:[#allocation7] sm:$0xf]
        %v521 = vld [vmem:[#allocation7 + $0x4] sm:$0xf]
        %v522 = vld [vmem:[#allocation7 + $0x8] sm:$0xf]
        %v523 = vld [vmem:[#allocation7 + $0xc] sm:$0xf]
        %v524 = vld [vmem:[#allocation7 + $0x10] sm:$0xf]
        %v525 = vld [vmem:[#allocation7 + $0x14] sm:$0xf]
        %v526 = vld [vmem:[#allocation7 + $0x18] sm:$0xf]
        %v527 = vld [vmem:[#allocation7 + $0x1c] sm:$0xf]
        %v528 = vld [vmem:[#allocation7 + $0x20] sm:$0xf]
        %v529 = vld [vmem:[#allocation7 + $0x24] sm:$0xf]
        %v530 = vld [vmem:[#allocation7 + $0x28] sm:$0xf]
        %v531 = vld [vmem:[#allocation7 + $0x2c] sm:$0xf]
        %v532 = vld [vmem:[#allocation7 + $0x30] sm:$0xf]
        %v533 = vld [vmem:[#allocation7 + $0x34] sm:$0xf]
        %v534 = vld [vmem:[#allocation7 + $0x38] sm:$0xf]
        %v535 = vld [vmem:[#allocation7 + $0x3c] sm:$0xf]
        %v536 = vld [vmem:[#allocation7 + $0x40] sm:$0xf]
        %v537 = vld [vmem:[#allocation7 + $0x44] sm:$0xf]
        %v538 = vld [vmem:[#allocation7 + $0x48] sm:$0xf]
        %v539 = vld [vmem:[#allocation7 + $0x4c] sm:$0xf]
        %v540 = vld [vmem:[#allocation7 + $0x50] sm:$0xf]
        %v541 = vld [vmem:[#allocation7 + $0x54] sm:$0xf]
        %v542 = vld [vmem:[#allocation7 + $0x58] sm:$0xf]
        %v543 = vld [vmem:[#allocation7 + $0x5c] sm:$0xf]
        %v544 = vld [vmem:[#allocation7 + $0x60] sm:$0xf]
        %v545 = vld [vmem:[#allocation7 + $0x64] sm:$0xf]
        %v546 = vld [vmem:[#allocation7 + $0x68] sm:$0xf]
        %v547 = vld [vmem:[#allocation7 + $0x6c] sm:$0xf]
        %v548 = vld [vmem:[#allocation7 + $0x70] sm:$0xf]
        %v549 = vld [vmem:[#allocation7 + $0x74] sm:$0xf]
        %v550 = vld [vmem:[#allocation7 + $0x78] sm:$0xf]
        %v551 = vld [vmem:[#allocation7 + $0x7c] sm:$0xf]
        %v552 = vld [vmem:[#allocation7 + $0x80] sm:$0xf]
        %v553 = vld [vmem:[#allocation7 + $0x84] sm:$0xf]
        %v554 = vld [vmem:[#allocation7 + $0x88] sm:$0xf]
        %v555 = vld [vmem:[#allocation7 + $0x8c] sm:$0xf]
        %v556 = vld [vmem:[#allocation7 + $0x90] sm:$0xf]
        %v557 = vld [vmem:[#allocation7 + $0x94] sm:$0xf]
        %v558 = vld [vmem:[#allocation7 + $0x98] sm:$0xf]
        %v559 = vld [vmem:[#allocation7 + $0x9c] sm:$0xf]
        %v560 = vld [vmem:[#allocation7 + $0xa0] sm:$0xf]
        %v561 = vld [vmem:[#allocation7 + $0xa4] sm:$0xf]
        %v562 = vld [vmem:[#allocation7 + $0xa8] sm:$0xf]
        %v563 = vld [vmem:[#allocation7 + $0xac] sm:$0xf]
        %v564 = vld [vmem:[#allocation7 + $0xb0] sm:$0xf]
        %v565 = vld [vmem:[#allocation7 + $0xb4] sm:$0xf]
        %v566 = vld [vmem:[#allocation7 + $0xb8] sm:$0xf]
        %v567 = vld [vmem:[#allocation7 + $0xbc] sm:$0xf]
        %v568 = vld [vmem:[%s3] sm:$0x1]
        %v570 = vperm.slane %v568, 0
        %v620 = vunpack.c.l.b16 %v520
        %v621 = vunpack.c.l.b16 %v521
        %v622 = vunpack.c.l.b16 %v522
        %v623 = vunpack.c.l.b16 %v523
        %v624 = vunpack.c.l.b16 %v524
        %v625 = vunpack.c.l.b16 %v525
        %v626 = vunpack.c.l.b16 %v526
        %v627 = vunpack.c.l.b16 %v527
        %v628 = vunpack.c.l.b16 %v528
        %v629 = vunpack.c.l.b16 %v529
        %v630 = vunpack.c.l.b16 %v530
        %v631 = vunpack.c.l.b16 %v531
        %v632 = vunpack.c.l.b16 %v532
        %v633 = vunpack.c.l.b16 %v533
        %v634 = vunpack.c.l.b16 %v534
        %v635 = vunpack.c.l.b16 %v535
        %v636 = vunpack.c.l.b16 %v536
        %v637 = vunpack.c.l.b16 %v537
        %v638 = vunpack.c.l.b16 %v538
        %v639 = vunpack.c.l.b16 %v539
        %v640 = vunpack.c.l.b16 %v540
        %v641 = vunpack.c.l.b16 %v541
        %v642 = vunpack.c.l.b16 %v542
        %v643 = vunpack.c.l.b16 %v543
        %v644 = vunpack.c.l.b16 %v544
        %v645 = vunpack.c.l.b16 %v545
        %v646 = vunpack.c.l.b16 %v546
        %v647 = vunpack.c.l.b16 %v547
        %v648 = vunpack.c.l.b16 %v548
        %v649 = vunpack.c.l.b16 %v549
        %v650 = vunpack.c.l.b16 %v550
        %v651 = vunpack.c.l.b16 %v551
        %v652 = vunpack.c.l.b16 %v552
        %v653 = vunpack.c.l.b16 %v553
        %v654 = vunpack.c.l.b16 %v554
        %v655 = vunpack.c.l.b16 %v555
        %v656 = vunpack.c.l.b16 %v556
        %v657 = vunpack.c.l.b16 %v557
        %v658 = vunpack.c.l.b16 %v558
        %v659 = vunpack.c.l.b16 %v559
        %v660 = vunpack.c.l.b16 %v560
        %v661 = vunpack.c.l.b16 %v561
        %v662 = vunpack.c.l.b16 %v562
        %v663 = vunpack.c.l.b16 %v563
        %v664 = vunpack.c.l.b16 %v564
        %v665 = vunpack.c.l.b16 %v565
        %v666 = vunpack.c.l.b16 %v566
        %v667 = vunpack.c.l.b16 %v567
        %v668 = vpack.c.b16 %v621, %v620
        %v669 = vpack.c.b16 %v623, %v622
        %v670 = vpack.c.b16 %v625, %v624
        %v671 = vpack.c.b16 %v627, %v626
        %v672 = vpack.c.b16 %v629, %v628
        %v673 = vpack.c.b16 %v631, %v630
        %v674 = vpack.c.b16 %v633, %v632
        %v675 = vpack.c.b16 %v635, %v634
        %v676 = vpack.c.b16 %v637, %v636
        %v677 = vpack.c.b16 %v639, %v638
        %v678 = vpack.c.b16 %v641, %v640
        %v679 = vpack.c.b16 %v643, %v642
        %v680 = vpack.c.b16 %v645, %v644
        %v681 = vpack.c.b16 %v647, %v646
        %v682 = vpack.c.b16 %v649, %v648
        %v683 = vpack.c.b16 %v651, %v650
        %v684 = vpack.c.b16 %v653, %v652
        %v685 = vpack.c.b16 %v655, %v654
        %v686 = vpack.c.b16 %v657, %v656
        %v687 = vpack.c.b16 %v659, %v658
        %v688 = vpack.c.b16 %v661, %v660
        %v689 = vpack.c.b16 %v663, %v662
        %v690 = vpack.c.b16 %v665, %v664
        %v691 = vpack.c.b16 %v667, %v666
        %716 = vmatpush.bf16.msra.mxu0 %v675
        %717 = vmatpush.bf16.msra.mxu0 %v674
        %718 = vmatpush.bf16.msra.mxu0 %v673
        %719 = vmatpush.bf16.msra.mxu0 %v672
        %720 = vmatpush.bf16.msra.mxu0 %v671
        %721 = vmatpush.bf16.msra.mxu0 %v670
        %722 = vmatpush.bf16.msra.mxu0 %v669
        %723 = vmatpush.bf16.msra.mxu0 %v668
        %724 = vmatmul.bf16.gmra.mxu0 %v515
        %v725 = vpop.f32.mrf.mxu0
        %v726 = vadd.f32 %v570, %v725
        %v727 = vpop.f32.mrf.mxu0
        %728 = vdwg.mxu0
        %729 = vmatpush.bf16.msra.mxu0 %v683
        %730 = vmatpush.bf16.msra.mxu0 %v682
        %731 = vmatpush.bf16.msra.mxu0 %v681
        %732 = vmatpush.bf16.msra.mxu0 %v680
        %733 = vmatpush.bf16.msra.mxu0 %v679
        %734 = vmatpush.bf16.msra.mxu0 %v678
        %735 = vmatpush.bf16.msra.mxu0 %v677
        %736 = vmatpush.bf16.msra.mxu0 %v676
        %737 = vmatmul.bf16.gmra.mxu0 %v516
        %v738 = vpop.f32.mrf.mxu0
        %v739 = vadd.f32 %v726, %v738
        %v740 = vpop.f32.mrf.mxu0
        %741 = vdwg.mxu0
        %742 = vmatpush.bf16.msra.mxu0 %v691
        %743 = vmatpush.bf16.msra.mxu0 %v690
        %744 = vmatpush.bf16.msra.mxu0 %v689
        %745 = vmatpush.bf16.msra.mxu0 %v688
        %746 = vmatpush.bf16.msra.mxu0 %v687
        %747 = vmatpush.bf16.msra.mxu0 %v686
        %748 = vmatpush.bf16.msra.mxu0 %v685
        %749 = vmatpush.bf16.msra.mxu0 %v684
        %750 = vmatmul.bf16.gmra.mxu0 %v517
        %v751 = vpop.f32.mrf.mxu0
        %v752 = vadd.f32 %v739, %v751
        %v753 = vpop.f32.mrf.mxu0
        %754 = vdwg.mxu0
        %v755 = vmax.f32 %v752, 0.0
        %v756 = vld [vmem:[#allocation8] sm:$0xf]
        %v757 = vld [vmem:[#allocation8 + $0x4] sm:$0xf]
        %v758 = vld [vmem:[#allocation8 + $0x8] sm:$0xf]
        %v759 = vld [vmem:[#allocation8 + $0xc] sm:$0xf]
        %v760 = vld [vmem:[#allocation8 + $0x10] sm:$0xf]
        %v761 = vld [vmem:[#allocation8 + $0x14] sm:$0xf]
        %v762 = vld [vmem:[#allocation8 + $0x18] sm:$0xf]
        %v763 = vld [vmem:[#allocation8 + $0x1c] sm:$0xf]
        %v764 = vld [vmem:[#allocation8 + $0x20] sm:$0xf]
        %v765 = vld [vmem:[#allocation8 + $0x24] sm:$0xf]
        %v766 = vld [vmem:[#allocation8 + $0x28] sm:$0xf]
        %v767 = vld [vmem:[#allocation8 + $0x2c] sm:$0xf]
        %v768 = vld [vmem:[#allocation8 + $0x30] sm:$0xf]
        %v769 = vld [vmem:[#allocation8 + $0x34] sm:$0xf]
        %v770 = vld [vmem:[#allocation8 + $0x38] sm:$0xf]
        %v771 = vld [vmem:[#allocation8 + $0x3c] sm:$0xf]
        %v772 = vld [vmem:[%s5] sm:$0x1]
        %v774 = vperm.slane %v772, 0
        %v792 = vunpack.c.l.b16 %v756
        %v793 = vunpack.c.l.b16 %v757
        %v794 = vunpack.c.l.b16 %v758
        %v795 = vunpack.c.l.b16 %v759
        %v796 = vunpack.c.l.b16 %v760
        %v797 = vunpack.c.l.b16 %v761
        %v798 = vunpack.c.l.b16 %v762
        %v799 = vunpack.c.l.b16 %v763
        %v800 = vunpack.c.l.b16 %v764
        %v801 = vunpack.c.l.b16 %v765
        %v802 = vunpack.c.l.b16 %v766
        %v803 = vunpack.c.l.b16 %v767
        %v804 = vunpack.c.l.b16 %v768
        %v805 = vunpack.c.l.b16 %v769
        %v806 = vunpack.c.l.b16 %v770
        %v807 = vunpack.c.l.b16 %v771
        %v808 = vpack.c.b16 %v793, %v792
        %v809 = vpack.c.b16 %v795, %v794
        %v810 = vpack.c.b16 %v797, %v796
        %v811 = vpack.c.b16 %v799, %v798
        %v812 = vpack.c.b16 %v801, %v800
        %v813 = vpack.c.b16 %v803, %v802
        %v814 = vpack.c.b16 %v805, %v804
        %v815 = vpack.c.b16 %v807, %v806
        %824 = vmatpush.bf16.msra.mxu0 %v815
        %825 = vmatpush.bf16.msra.mxu0 %v814
        %826 = vmatpush.bf16.msra.mxu0 %v813
        %827 = vmatpush.bf16.msra.mxu0 %v812
        %828 = vmatpush.bf16.msra.mxu0 %v811
        %829 = vmatpush.bf16.msra.mxu0 %v810
        %830 = vmatpush.bf16.msra.mxu0 %v809
        %831 = vmatpush.bf16.msra.mxu0 %v808
        %832 = vmatmul.bf16.gmra.mxu0 %v519
        %v833 = vpop.f32.mrf.mxu0
        %v834 = vadd.f32 %v774, %v833
        %v835 = vpop.f32.mrf.mxu0
        %836 = vdwg.mxu0
        %v837 = vmax.f32 %v834, 0.0
        %v838 = vpack.c.bf16 %v755, %v755
        %v839 = vld [vmem:[#allocation10] sm:$0xf]
        %v840 = vld [vmem:[#allocation10 + $0x4] sm:$0xf]
        %v841 = vld [vmem:[#allocation10 + $0x8] sm:$0xf]
        %v842 = vld [vmem:[#allocation10 + $0xc] sm:$0xf]
        %v843 = vld [vmem:[#allocation10 + $0x10] sm:$0xf]
        %v844 = vld [vmem:[#allocation10 + $0x14] sm:$0xf]
        %v845 = vld [vmem:[#allocation10 + $0x18] sm:$0xf]
        %v846 = vld [vmem:[#allocation10 + $0x1c] sm:$0xf]
        %v847 = vld [vmem:[#allocation10 + $0x20] sm:$0xf]
        %v848 = vld [vmem:[#allocation10 + $0x24] sm:$0xf]
        %v849 = vld [vmem:[#allocation10 + $0x28] sm:$0xf]
        %v850 = vld [vmem:[#allocation10 + $0x2c] sm:$0xf]
        %v851 = vld [vmem:[#allocation10 + $0x30] sm:$0xf]
        %v852 = vld [vmem:[#allocation10 + $0x34] sm:$0xf]
        %v853 = vld [vmem:[#allocation10 + $0x38] sm:$0xf]
        %v854 = vld [vmem:[#allocation10 + $0x3c] sm:$0xf]
        %v855 = vpack.c.bf16 %v837, %v837
        %v856 = vld [vmem:[#allocation11] sm:$0xf]
        %v857 = vld [vmem:[#allocation11 + $0x4] sm:$0xf]
        %v858 = vld [vmem:[#allocation11 + $0x8] sm:$0xf]
        %v859 = vld [vmem:[#allocation11 + $0xc] sm:$0xf]
        %v860 = vld [vmem:[#allocation11 + $0x10] sm:$0xf]
        %v861 = vld [vmem:[#allocation11 + $0x14] sm:$0xf]
        %v862 = vld [vmem:[#allocation11 + $0x18] sm:$0xf]
        %v863 = vld [vmem:[#allocation11 + $0x1c] sm:$0xf]
        %v864 = vld [vmem:[#allocation11 + $0x20] sm:$0xf]
        %v865 = vld [vmem:[#allocation11 + $0x24] sm:$0xf]
        %v866 = vld [vmem:[#allocation11 + $0x28] sm:$0xf]
        %v867 = vld [vmem:[#allocation11 + $0x2c] sm:$0xf]
        %v868 = vld [vmem:[#allocation11 + $0x30] sm:$0xf]
        %v869 = vld [vmem:[#allocation11 + $0x34] sm:$0xf]
        %v870 = vld [vmem:[#allocation11 + $0x38] sm:$0xf]
        %v871 = vld [vmem:[#allocation11 + $0x3c] sm:$0xf]
        %v888 = vunpack.c.l.b16 %v856
        %v889 = vunpack.c.l.b16 %v857
        %v890 = vunpack.c.l.b16 %v858
        %v891 = vunpack.c.l.b16 %v859
        %v892 = vunpack.c.l.b16 %v860
        %v893 = vunpack.c.l.b16 %v861
        %v894 = vunpack.c.l.b16 %v862
        %v895 = vunpack.c.l.b16 %v863
        %v896 = vunpack.c.l.b16 %v864
        %v897 = vunpack.c.l.b16 %v865
        %v898 = vunpack.c.l.b16 %v866
        %v899 = vunpack.c.l.b16 %v867
        %v900 = vunpack.c.l.b16 %v868
        %v901 = vunpack.c.l.b16 %v869
        %v902 = vunpack.c.l.b16 %v870
        %v903 = vunpack.c.l.b16 %v871
        %v904 = vpack.c.b16 %v889, %v888
        %v905 = vpack.c.b16 %v891, %v890
        %v906 = vpack.c.b16 %v893, %v892
        %v907 = vpack.c.b16 %v895, %v894
        %v908 = vpack.c.b16 %v897, %v896
        %v909 = vpack.c.b16 %v899, %v898
        %v910 = vpack.c.b16 %v901, %v900
        %v911 = vpack.c.b16 %v903, %v902
        %920 = vmatpush.bf16.msra.mxu0 %v911
        %921 = vmatpush.bf16.msra.mxu0 %v910
        %922 = vmatpush.bf16.msra.mxu0 %v909
        %923 = vmatpush.bf16.msra.mxu0 %v908
        %924 = vmatpush.bf16.msra.mxu0 %v907
        %925 = vmatpush.bf16.msra.mxu0 %v906
        %926 = vmatpush.bf16.msra.mxu0 %v905
        %927 = vmatpush.bf16.msra.mxu0 %v904
        %928 = vmatmul.bf16.gmra.mxu0 %v855
        %v929 = vpop.f32.mrf.mxu0
        %v930 = vadd.f32 0.0, %v929
        %v931 = vpop.f32.mrf.mxu0
        %932 = vdwg.mxu0
        %v949 = vunpack.c.l.b16 %v839
        %v950 = vunpack.c.l.b16 %v840
        %v951 = vunpack.c.l.b16 %v841
        %v952 = vunpack.c.l.b16 %v842
        %v953 = vunpack.c.l.b16 %v843
        %v954 = vunpack.c.l.b16 %v844
        %v955 = vunpack.c.l.b16 %v845
        %v956 = vunpack.c.l.b16 %v846
        %v957 = vunpack.c.l.b16 %v847
        %v958 = vunpack.c.l.b16 %v848
        %v959 = vunpack.c.l.b16 %v849
        %v960 = vunpack.c.l.b16 %v850
        %v961 = vunpack.c.l.b16 %v851
        %v962 = vunpack.c.l.b16 %v852
        %v963 = vunpack.c.l.b16 %v853
        %v964 = vunpack.c.l.b16 %v854
        %v965 = vpack.c.b16 %v950, %v949
        %v966 = vpack.c.b16 %v952, %v951
        %v967 = vpack.c.b16 %v954, %v953
        %v968 = vpack.c.b16 %v956, %v955
        %v969 = vpack.c.b16 %v958, %v957
        %v970 = vpack.c.b16 %v960, %v959
        %v971 = vpack.c.b16 %v962, %v961
        %v972 = vpack.c.b16 %v964, %v963
        %981 = vmatpush.bf16.msra.mxu0 %v972
        %982 = vmatpush.bf16.msra.mxu0 %v971
        %983 = vmatpush.bf16.msra.mxu0 %v970
        %984 = vmatpush.bf16.msra.mxu0 %v969
        %985 = vmatpush.bf16.msra.mxu0 %v968
        %986 = vmatpush.bf16.msra.mxu0 %v967
        %987 = vmatpush.bf16.msra.mxu0 %v966
        %988 = vmatpush.bf16.msra.mxu0 %v965
        %989 = vmatmul.bf16.gmra.mxu0 %v838
        %v990 = vpop.f32.mrf.mxu0
        %v991 = vadd.f32 %v930, %v990
        %v992 = vpop.f32.mrf.mxu0
        %993 = vdwg.mxu0
        %v994 = vld [vmem:[%s8] sm:$0x1]
        %v996 = vperm.slane %v994, 0
        %v998 = vadd.f32 %v991, %v996
        %v999 = vmax.f32 %v998, 0.0
        %v1000 = vld [vmem:[%s9] sm:$0x1]
        %v1002 = vperm.slane %v1000, 0
        %v1004 = vmul.f32 %v999, %v1002
        %1005 = vadd.xlane.f32.xlu0 %v1004
        %v1006 = vpop.xlane.xlu0 %1005
        %v1007 = vld [vmem:[#allocation2] sm:$0x1]
        %v1009 = vperm.slane %v1007, 0
        %v1011 = vadd.f32 %v1006, %v1009
        %vm1012 = vcmask 7168
        %1013 = vst.msk [vmem:[%s511] sm:$0xff] %vm1012, %v1011
        %p1014 = scmp.lt.s32.totalorder %s32, 1
        %s1015 = scalar_select %p1014, %s32, 1
        %s1016 = smul.addr %s1015, 8
        %s1017 = scalar_lea.vmem %s11, %s1016
        // Predicated region
        $region89: #{tpu_custom_call.1} parent=63 // pred_check
          %p1018 = pneg %p291
        $region90: #{tpu_custom_call.1} parent=63 // pred_check_branch
          %1020 = sbr.rel (%p1018) target = $region92
        $region91: #{tpu_custom_call.1} parent=63 // pred_region
          _
        $region92: #{tpu_custom_call.1} parent=63 // pred_fallthru
          _
      $region64: #{tpu_custom_call.1} parent=5 // pred_fallthru
        _
      %p1021 = scmp.le.s32.totalorder 2, %s27
      // Predicated region
      $region93: #{tpu_custom_call.1} parent=5 // pred_check
        %p1022 = pneg %p1021
      $region94: #{tpu_custom_call.1} parent=5 // pred_check_branch
        %1024 = sbr.rel (%p1022) target = $region96
      $region95: #{tpu_custom_call.1} parent=5 // pred_region
        %s1025 = ssub.s32 %s27, 2
        // Predicated region
        $region97: #{tpu_custom_call.1} parent=95 // pred_check
          %p1026 = pneg %p297
        $region98: #{tpu_custom_call.1} parent=95 // pred_check_branch
          %1028 = sbr.rel (%p1026) target = $region100
        $region99: #{tpu_custom_call.1} parent=95 // pred_region
          %p1029 = scmp.lt.s32.totalorder %s33, 1
          %s1030 = scalar_select %p1029, %s33, 1
          %s1031 = smul.addr %s1030, 8
          %s1032 = scalar_lea.vmem %s11, %s1031
        $region100: #{tpu_custom_call.1} parent=95 // pred_fallthru
          _
      $region96: #{tpu_custom_call.1} parent=5 // pred_fallthru
        _
    $region6: #{tpu_custom_call.1} parent=1 // loop_footer
      %s31 = sadd.s32 1, %s27
    $region7: #{tpu_custom_call.1} parent=1 // loop_footer_branch
      %26 = sbr.rel target = $region3
    $region8: #{tpu_custom_call.1} parent=1 // loop_exit
      _
    %1033 = vsyncpa [#allocation4], 1
    %s1034 = scalar_lea.sflag [#allocation4], 1
    %1035 = vsyncpa %s1034, 1
    %1036 = vsyncpa [#allocation6], 1
    %s1037 = scalar_lea.sflag [#allocation6], 1
    %1038 = vsyncpa %s1037, 1
    %1039 = vsyncpa [#allocation9], 1
    %1040 = vsyncpa [#allocation12], 1

</llo_original>
